<compile_context>
chip_gen: v5e
topology: v5e:2x2
jax: 0.10.0
libtpu: 0.0.40
codegen_flags: <defaults>
</compile_context>

<pallas_src>
import functools

import jax
import jax.numpy as jnp
from jax import lax
from jax.experimental import pallas as pl
from jax.experimental.pallas import tpu as pltpu

MARGIN = 0.2          # ContrastiveLoss(margin=0.2, measure='cosine')
_EPS = 1e-24          # keeps all-zero (padding) rows at 0 instead of NaN


# ---------------------------------------------------------------------------
# Pass 1: row-wise L2 normalization of s (done once, not once per grid step).
# ---------------------------------------------------------------------------
def _l2norm_kernel(x_ref, o_ref):
    x = x_ref[...].astype(jnp.float32)
    ssq = jnp.sum(x * x, axis=-1, keepdims=True)
    o_ref[...] = (x * lax.rsqrt(jnp.maximum(ssq, _EPS))).astype(o_ref.dtype)


def _l2norm(x, tile):
    rows, d = x.shape
    return pl.pallas_call(
        _l2norm_kernel,
        grid=(rows // tile,),
        in_specs=[pl.BlockSpec((tile, d), lambda r: (r, 0))],
        out_shape=jax.ShapeDtypeStruct((rows, d), x.dtype),
        out_specs=pl.BlockSpec((tile, d), lambda r: (r, 0)),
    )(x)


# ---------------------------------------------------------------------------
# Pass 2: tiled contrastive loss.
# ---------------------------------------------------------------------------
def _contrastive_kernel(im_ref, sn_ref,
                        sums_ref, hn_s_ref, hn_im_ref,
                        imn_sc, rmax_sc, rarg_sc,
                        cmax_sc, carg_sc, dcol_sc,
                        cs_acc, ci_acc,
                        *, margin, tile, n_valid, padded):
    i = pl.program_id(0)            # row-tile index (im rows / rows of scores)
    j = pl.program_id(1)            # col-tile index (s rows / cols of scores)
    ni = pl.num_programs(0)
    nj = pl.num_programs(1)
    T = tile
    sentinel = 2 ** 30              # > any valid global index
    neg = -1e30                     # < any real cosine score

    # ---- init scalar accumulators at the very first grid step ----
    @pl.when((i == 0) & (j == 0))
    def _():
        cs_acc[...] = jnp.zeros_like(cs_acc)
        ci_acc[...] = jnp.zeros_like(ci_acc)

    # ---- normalize the im row tile once per row sweep (j == 0) ----
    @pl.when(j == 0)
    def _():
        x = im_ref[...].astype(jnp.float32)
        ssq = jnp.sum(x * x, axis=-1, keepdims=True)
        imn_sc[...] = x * lax.rsqrt(jnp.maximum(ssq, _EPS))

    # ---- (T, T) scores tile on the MXU, f32 accumulation, no transpose ----
    scores = lax.dot_general(
        imn_sc[...], sn_ref[...].astype(jnp.float32),
        dimension_numbers=(((1,), (1,)), ((), ())),
        preferred_element_type=jnp.float32)

    lane_ids = lax.broadcasted_iota(jnp.int32, (1, T), 1)       # (1, T)
    sub_ids = lax.broadcasted_iota(jnp.int32, (T, 1), 0)        # (T, 1)
    gcol = lane_ids + j * T                                      # global col ids
    grow = sub_ids + i * T                                       # global row ids

    if padded:
        # mask padded columns out of the row-side stats and padded rows out of
        # the column-side stats.
        scores_r = jnp.where(gcol < n_valid, scores, neg)
        scores_c = jnp.where(grow < n_valid, scores, neg)
    else:
        scores_r = scores
        scores_c = scores

    # ---- diagonal tile: extract d[] for these rows / columns (lane form) ----
    @pl.when(i == j)
    def _():
        sel = sub_ids == lane_ids                                # (T, T) one-hot
        dcol_sc[j] = jnp.sum(jnp.where(sel, scores, 0.0),
                             axis=0, keepdims=True)              # (1, T)

    # ---- row side: online max / first-argmax over column tiles ----
    tile_rmax = jnp.max(scores_r, axis=1, keepdims=True)                      # (T,1)
    tile_rarg = jnp.min(jnp.where(scores_r == tile_rmax, gcol, sentinel),
                        axis=1, keepdims=True)                                # (T,1)

    @pl.when(j == 0)
    def _():
        rmax_sc[...] = tile_rmax
        rarg_sc[...] = tile_rarg

    @pl.when(j > 0)
    def _():
        old_max = rmax_sc[...]
        take = tile_rmax > old_max          # strict > keeps the earlier argmax
        rarg_sc[...] = jnp.where(take, tile_rarg, rarg_sc[...])
        rmax_sc[...] = jnp.maximum(old_max, tile_rmax)

    # ---- column side: online max / first-argmax over row tiles ----
    tile_cmax = jnp.max(scores_c, axis=0, keepdims=True)                      # (1,T)
    tile_carg = jnp.min(jnp.where(scores_c == tile_cmax, grow, sentinel),
                        axis=0, keepdims=True)                                # (1,T)

    @pl.when(i == 0)
    def _():
        cmax_sc[j] = tile_cmax
        carg_sc[j] = tile_carg

    @pl.when(i > 0)
    def _():
        old_max = cmax_sc[j]
        old_arg = carg_sc[j]
        take = tile_cmax > old_max
        carg_sc[j] = jnp.where(take, tile_carg, old_arg)
        cmax_sc[j] = jnp.maximum(old_max, tile_cmax)

    # ---- finalize this row tile once all column tiles are seen ----
    @pl.when(j == nj - 1)
    def _():
        # fold (T, 1) sublane stats to (1, T) lane stats via one-hot + sublane
        # reduce (once per row tile; keeps HN_s output lane-dense).
        sel = sub_ids == lane_ids
        rmax_lane = jnp.sum(jnp.where(sel, rmax_sc[...], 0.0),
                            axis=0, keepdims=True)               # (1, T) f32
        rarg_lane = jnp.sum(jnp.where(sel, rarg_sc[...], 0),
                            axis=0, keepdims=True)               # (1, T) i32
        dvals = dcol_sc[i]                                        # diag, (1, T)
        cost_rows = jnp.maximum(margin + rmax_lane - dvals, 0.0)
        if padded:
            cost_rows = jnp.where(lane_ids + i * T < n_valid, cost_rows, 0.0)
        cs_acc[...] += jnp.sum(cost_rows, keepdims=True)
        hn_s_ref[i] = rarg_lane

    # ---- finalize this column tile once all row tiles are seen ----
    @pl.when(i == ni - 1)
    def _():
        cmax = cmax_sc[j]
        dvals = dcol_sc[j]
        cost_cols = jnp.maximum(margin + cmax - dvals, 0.0)
        if padded:
            cost_cols = jnp.where(gcol < n_valid, cost_cols, 0.0)
        ci_acc[...] += jnp.sum(cost_cols, keepdims=True)
        hn_im_ref[j] = carg_sc[j]

    # ---- final grid step: emit the two scalar sums, lane-dense ----
    @pl.when((i == ni - 1) & (j == nj - 1))
    def _():
        lane128 = lax.broadcasted_iota(jnp.int32, (1, 128), 1)
        sums_ref[...] = (jnp.where(lane128 == 0, cs_acc[...], 0.0)
                         + jnp.where(lane128 == 1, ci_acc[...], 0.0))


def contrastive_loss(im, s, margin=MARGIN):
    """Returns (cost_s, cost_im, HN_s, HN_im) like ContrastiveLoss.forward."""
    n, d = im.shape
    assert s.shape == (n, d)

    # Tile choice: 256 feeds the 2x256^2 MXU when N divides evenly, else 128
    # tiles with zero-padding + masking for the remainder.
    T = 256 if (n % 256 == 0) else 128
    Np = ((n + T - 1) // T) * T
    J = Np // T
    padded = Np != n
    if padded:
        im = jnp.pad(im, ((0, Np - n), (0, 0)))
        s = jnp.pad(s, ((0, Np - n), (0, 0)))

    # Normalize s once (tiny elementwise pre-pass); im is normalized inside
    # the main kernel once per row sweep.
    s_n = _l2norm(s, T)

    kernel = functools.partial(_contrastive_kernel, margin=float(margin),
                               tile=T, n_valid=n, padded=padded)

    sums, hn_s, hn_im = pl.pallas_call(
        kernel,
        grid=(J, J),
        in_specs=[
            pl.BlockSpec((T, d), lambda i, j: (i, 0)),   # raw im row tile
            pl.BlockSpec((T, d), lambda i, j: (j, 0)),   # normalized s col tile
        ],
        out_shape=(
            jax.ShapeDtypeStruct((1, 128), jnp.float32),   # [cost_s, cost_im, 0...]
            jax.ShapeDtypeStruct((J, 1, T), jnp.int32),    # HN_s (lane-dense)
            jax.ShapeDtypeStruct((J, 1, T), jnp.int32),    # HN_im (lane-dense)
        ),
        out_specs=(
            pl.BlockSpec((1, 128), lambda i, j: (0, 0)),
            pl.BlockSpec((J, 1, T), lambda i, j: (0, 0, 0)),
            pl.BlockSpec((J, 1, T), lambda i, j: (0, 0, 0)),
        ),
        scratch_shapes=[
            pltpu.VMEM((T, d), jnp.float32),      # imn_sc  (normalized im tile)
            pltpu.VMEM((T, 1), jnp.float32),      # rmax_sc
            pltpu.VMEM((T, 1), jnp.int32),        # rarg_sc
            pltpu.VMEM((J, 1, T), jnp.float32),   # cmax_sc
            pltpu.VMEM((J, 1, T), jnp.int32),     # carg_sc
            pltpu.VMEM((J, 1, T), jnp.float32),   # dcol_sc (diag, lane form)
            pltpu.VMEM((1, 1), jnp.float32),      # cs_acc
            pltpu.VMEM((1, 1), jnp.float32),      # ci_acc
        ],
        compiler_params=pltpu.CompilerParams(
            # Both grid axes carry cross-step accumulations (rows: j-sweep,
            # cols: i-sweep), so both must be "arbitrary".
            dimension_semantics=("arbitrary", "arbitrary")),
    )(im, s_n)

    cost_s = sums[0, 0]
    cost_im = sums[0, 1]
    hn_s = hn_s.reshape(Np)[:n]     # torch returns int64; int32 is sufficient
    hn_im = hn_im.reshape(Np)[:n]
    return cost_s, cost_im, hn_s, hn_im


# ---------------------------------------------------------------------------
# Pure-JAX reference and checks.
# ---------------------------------------------------------------------------
def _reference(im, s, margin=MARGIN):
    im = im.astype(jnp.float32)
    s = s.astype(jnp.float32)
    im_n = im / jnp.linalg.norm(im, axis=-1, keepdims=True)
    s_n = s / jnp.linalg.norm(s, axis=-1, keepdims=True)
    scores = im_n @ s_n.T
    diag = jnp.diag(scores)
    cost_s = jnp.maximum(margin + scores - diag[:, None], 0.0)
    cost_im = jnp.maximum(margin + scores - diag[None, :], 0.0)
    hn_s = jnp.argmax(scores - diag[:, None], axis=1)
    hn_im = jnp.argmax(scores - diag[None, :], axis=0)
    idx = jnp.arange(scores.shape[0])
    return (cost_s[idx, hn_s].sum(), cost_im[hn_im, idx].sum(),
            hn_s, hn_im, scores)


def _check(im, s, margin=MARGIN):
    cost_s, cost_im, hn_s, hn_im = jax.block_until_ready(
        contrastive_loss(im, s, margin))
    ref_cs, ref_ci, _, _, scores = _reference(im, s, margin)
    n = scores.shape[0]

    # Cost sums: tolerance accounts for the default MXU matmul precision used
    # both inside the kernel and in the XLA reference.
    assert jnp.allclose(cost_s, ref_cs, rtol=5e-3, atol=5e-2), (cost_s, ref_cs)
    assert jnp.allclose(cost_im, ref_ci, rtol=5e-3, atol=5e-2), (cost_im, ref_ci)

    # Hard negatives: indices must be valid and attain (within matmul
    # tolerance) the reference row / column maximum; exact near-ties may
    # resolve differently between the MXU kernel and the XLA reference.
    idx = jnp.arange(n)
    assert bool(jnp.all((hn_s >= 0) & (hn_s < n)))
    assert bool(jnp.all((hn_im >= 0) & (hn_im < n)))
    row_max = scores.max(axis=1)
    col_max = scores.max(axis=0)
    assert bool(jnp.all(scores[idx, hn_s] >= row_max - 5e-3)), "HN_s not row max"
    assert bool(jnp.all(scores[hn_im, idx] >= col_max - 5e-3)), "HN_im not col max"


if __name__ == "__main__":
    key = jax.random.PRNGKey(0)
    ks = jax.random.split(key, 8)

    # Multi-tile grid (3x3 of 128-tiles), no padding: online argmax path.
    _check(jax.random.normal(ks[0], (384, 64), dtype=jnp.float32),
           jax.random.normal(ks[1], (384, 64), dtype=jnp.float32))

    # Single 256-tile (matches the 256-wide MXU), no padding.
    _check(jax.random.normal(ks[2], (256, 96), dtype=jnp.float32),
           jax.random.normal(ks[3], (256, 96), dtype=jnp.float32))

    # Non-multiple batch -> padded to 256, 2x2 grid, masked rows/cols.
    _check(jax.random.normal(ks[4], (200, 48), dtype=jnp.float32),
           jax.random.normal(ks[5], (200, 48), dtype=jnp.float32))

    # Module-scale small batch (bs ~ 30-40), padded to a single 128-tile.
    _check(jax.random.normal(ks[6], (40, 32), dtype=jnp.float32),
           jax.random.normal(ks[7], (40, 32), dtype=jnp.float32))

    print("KERNEL_OK")
</pallas_src>

<mosaic_0001>
module attributes {stable_mosaic.version = 11 : i64} {
  func.func @_l2norm_kernel(%arg0: i32, %arg1: memref<128x64xf32, #tpu.memory_space<vmem>>, %arg2: memref<128x64xf32, #tpu.memory_space<vmem>>) attributes {dimension_semantics = [#tpu.dimension_semantics<arbitrary>], iteration_bounds = array<i64: 3>, scalar_prefetch = 0 : i64, scratch_operands = 0 : i64, tpu.core_type = #tpu.core_type<tc>, window_params = [{transform_indices = @transform_0, window_bounds = array<i64: 128, 64>}, {transform_indices = @transform_1, window_bounds = array<i64: 128, 64>}]} {
    %c0 = arith.constant 0 : index
    %c0_0 = arith.constant 0 : index
    %0 = vector.load %arg1[%c0, %c0_0] : memref<128x64xf32, #tpu.memory_space<vmem>>, vector<128x64xf32>
    %1 = arith.mulf %0, %0 : vector<128x64xf32>
    %cst = arith.constant dense<0.000000e+00> : vector<128xf32>
    %2 = vector.multi_reduction <add>, %1, %cst [1] : vector<128x64xf32> to vector<128xf32>
    %3 = vector.shape_cast %2 : vector<128xf32> to vector<128x1xf32>
    %cst_1 = arith.constant 1.000000e-24 : f32
    %4 = vector.broadcast %cst_1 : f32 to vector<128x1xf32>
    %5 = arith.maximumf %3, %4 : vector<128x1xf32>
    %6 = math.rsqrt %5 : vector<128x1xf32>
    %7 = vector.broadcast %6 : vector<128x1xf32> to vector<128x64xf32>
    %8 = arith.mulf %0, %7 : vector<128x64xf32>
    %c0_2 = arith.constant 0 : index
    %c0_3 = arith.constant 0 : index
    %9 = vector.load %arg2[%c0_2, %c0_3] : memref<128x64xf32, #tpu.memory_space<vmem>>, vector<128x64xf32>
    tpu.vector_store %arg2[%c0_2, %c0_3], %8 {strides = array<i32>} : memref<128x64xf32, #tpu.memory_space<vmem>>, vector<128x64xf32>,
    return
  }
  func.func @transform_0(%arg0: i32) -> (i32, i32) {
    %c0_i32 = arith.constant 0 : i32
    %c0_i32_0 = arith.constant 0 : i32
    return %arg0, %c0_i32 : i32, i32
  }
  func.func @transform_1(%arg0: i32) -> (i32, i32) {
    %c0_i32 = arith.constant 0 : i32
    %c0_i32_0 = arith.constant 0 : i32
    return %arg0, %c0_i32 : i32, i32
  }
}

</mosaic_0001>

<llo_original>
// kernel: tpu_custom_call.1
$region0: #{tpu_custom_call.1}
  #allocation0 [shape = 'u32[]', space=smem, size = 0x4, offset = 0x4, fixed_abs, tag = 'smem constant byte address 0x4 - core index']
  #allocation1 [shape = 'u32[72,128]{1,0:T(1,128)}', space=vmem, size = 0x9000, scoped, tag = 'internal scratch']
  %s0 = inlined_call_operand.vmem [shape: f32[384,64], index: 0, kind: input, shape index: {}]
  %s1 = inlined_call_operand.vmem [shape: f32[384,64], index: 1, kind: output, shape index: {}]
  %s2 = sld [smem:[#allocation0]]
  $region37: #{tpu_custom_call.1} parent=0
    _
  %s4 = ssub.s32 1, %s2
  %s5 = scalar_select 0, %s4, %s2
  loop: start=0, step=1, limit=5
  $region2: #{tpu_custom_call.1} parent=0 // loop_pre_header
    _
  $region3: #{tpu_custom_call.1} parent=0 // loop_header
    %s7 = sphi 0, %s11
    %p8 = scmp.ge.s32.totalorder %s7, 5
    %s17 = sphi 0, %s19
    %s20 = sphi 0, %s17
    %s21 = sphi 0, %s20
    %s37 = sphi 0, %s21
    %s43 = sphi 0, %s45
    %s46 = sphi 0, %s43
    %s47 = sphi 0, %s46
    %s63 = sphi 0, %s47
  $region4: #{tpu_custom_call.1} parent=0 // loop_header_branch
    %10 = sbr.rel (%p8) target = $region8
  $region5: #{tpu_custom_call.1} parent=0 // loop_body
    %s12 = ssub.s32 %s7, 1
    %s13 = ssub.s32 %s7, 2
    %s14 = sadd.s32 %s7, 1
    %s15 = ssub.s32 %s7, %s14
    %p16 = scmp.eq.s32.totalorder %s15, 0
    %s18 = sadd.s32 %s17, 1
    %s19 = scalar_select %p16, %s17, %s18
    %p22 = pneg %p16
    %p23 = scmp.eq.s32.totalorder %s7, 2
    %p24 = por %p22, %p23
    %p25 = scmp.ne.s32.totalorder %s17, %s20
    %p26 = scmp.eq.s32.totalorder %s7, 0
    %p27 = por %p25, %p26
    %p28 = scmp.ne.s32.totalorder %s17, %s20
    %p29 = scmp.eq.s32.totalorder %s12, 2
    %p30 = por %p28, %p29
    %p31 = scmp.ne.s32.totalorder %s20, %s21
    %p32 = scmp.eq.s32.totalorder %s12, 0
    %p33 = por %p31, %p32
    %p34 = scmp.ne.s32.totalorder %s20, %s21
    %p35 = scmp.eq.s32.totalorder %s13, 2
    %p36 = por %p34, %p35
    %p38 = scmp.ne.s32.totalorder %s21, %s37
    %p39 = scmp.eq.s32.totalorder %s13, 0
    %p40 = por %p38, %p39
    %s41 = ssub.s32 %s7, %s14
    %p42 = scmp.eq.s32.totalorder %s41, 0
    %s44 = sadd.s32 %s43, 1
    %s45 = scalar_select %p42, %s43, %s44
    %p48 = pneg %p42
    %p49 = scmp.eq.s32.totalorder %s7, 2
    %p50 = por %p48, %p49
    %p51 = scmp.ne.s32.totalorder %s43, %s46
    %p52 = scmp.eq.s32.totalorder %s7, 0
    %p53 = por %p51, %p52
    %p54 = scmp.ne.s32.totalorder %s43, %s46
    %p55 = scmp.eq.s32.totalorder %s12, 2
    %p56 = por %p54, %p55
    %p57 = scmp.ne.s32.totalorder %s46, %s47
    %p58 = scmp.eq.s32.totalorder %s12, 0
    %p59 = por %p57, %p58
    %p60 = scmp.ne.s32.totalorder %s46, %s47
    %p61 = scmp.eq.s32.totalorder %s13, 2
    %p62 = por %p60, %p61
    %p64 = scmp.ne.s32.totalorder %s47, %s63
    %p65 = scmp.eq.s32.totalorder %s13, 0
    %p66 = por %p64, %p65
    %p67 = scmp.le.s32.totalorder 1, %s7
    %p68 = scmp.lt.s32.totalorder %s7, 4
    %p69 = pnand %p67, %p68
    %p70 = pneg %p69
    // Predicated region
    $region9: #{tpu_custom_call.1} parent=5 // pred_check
      _
    $region10: #{tpu_custom_call.1} parent=5 // pred_check_branch
      %72 = sbr.rel (%p69) target = $region12
    $region11: #{tpu_custom_call.1} parent=5 // pred_region
      %s73 = ssub.s32 %s7, 1
    $region12: #{tpu_custom_call.1} parent=5 // pred_fallthru
      _
    %p74 = scmp.lt.s32.totalorder %s7, 3
    // Predicated region
    $region13: #{tpu_custom_call.1} parent=5 // pred_check
      %p75 = pneg %p74
    $region14: #{tpu_custom_call.1} parent=5 // pred_check_branch
      %77 = sbr.rel (%p75) target = $region16
    $region15: #{tpu_custom_call.1} parent=5 // pred_region
      // Predicated region
      $region17: #{tpu_custom_call.1} parent=15 // pred_check
        %p78 = pneg %p27
      $region18: #{tpu_custom_call.1} parent=15 // pred_check_branch
        %80 = sbr.rel (%p78) target = $region20
      $region19: #{tpu_custom_call.1} parent=15 // pred_region
        %s81 = smul.u32 16, %s7
        %p82 = scmp.lt.s32.totalorder %s81, 47
        %s83 = scalar_select %p82, %s81, 47
        %s84 = smul.addr %s83, 8
        %s85 = scalar_lea.vmem %s0, %s84
        %s86 = smul.u32 16, %s7
      $region20: #{tpu_custom_call.1} parent=15 // pred_fallthru
        _
    $region16: #{tpu_custom_call.1} parent=5 // pred_fallthru
      _
    %p87 = scmp.le.s32.totalorder 1, %s7
    %p88 = scmp.lt.s32.totalorder %s7, 4
    %p89 = pnand %p87, %p88
    %p90 = pneg %p89
    // Predicated region
    $region21: #{tpu_custom_call.1} parent=5 // pred_check
      _
    $region22: #{tpu_custom_call.1} parent=5 // pred_check_branch
      %92 = sbr.rel (%p89) target = $region24
    $region23: #{tpu_custom_call.1} parent=5 // pred_region
      %s93 = ssub.s32 %s7, 1
      %s94 = smul.u32 16, %s12
      %p95 = scmp.lt.s32.totalorder %s94, 47
      %s96 = scalar_select %p95, %s94, 47
      %s97 = smul.addr %s96, 8
      %s98 = scalar_lea.vmem %s0, %s97
      %p99 = pneg %p33
      %p100 = pneg %p30
      %p101 = pneg %p59
      %p102 = pneg %p56
      %s103 = smul.u32 16, %s12
      %p104 = scmp.lt.s32.totalorder %s103, 47
      %s105 = scalar_select %p104, %s103, 47
      %s106 = smul.addr %s105, 8
      %s107 = scalar_lea.vmem %s1, %s106
      %s108 = smul.u32 16, %s12
      %p109 = scmp.lt.s32.totalorder %s108, 47
      %s110 = scalar_select %p109, %s108, 47
      %s111 = smul.addr %s110, 8
      %s112 = scalar_lea.vmem %s0, %s111
      %s113 = smul.u32 16, %s12
      %s114 = smul.u32 16, %s12
      %p115 = scmp.lt.s32.totalorder %s114, 47
      %s116 = scalar_select %p115, %s114, 47
      %s117 = smul.addr %s116, 8
      %s118 = scalar_lea.vmem %s1, %s117
      %s119 = smul.u32 16, %s12
      %v120 = vld [vmem:[%s112] sm:$0xff]
      %v121 = vld [vmem:[%s112 + $0x8] sm:$0xff]
      %v122 = vld [vmem:[%s112 + $0x10] sm:$0xff]
      %v123 = vld [vmem:[%s112 + $0x18] sm:$0xff]
      %v124 = vld [vmem:[%s112 + $0x20] sm:$0xff]
      %v125 = vld [vmem:[%s112 + $0x28] sm:$0xff]
      %v126 = vld [vmem:[%s112 + $0x30] sm:$0xff]
      %v127 = vld [vmem:[%s112 + $0x38] sm:$0xff]
      %v128 = vld [vmem:[%s112 + $0x40] sm:$0xff]
      %v129 = vld [vmem:[%s112 + $0x48] sm:$0xff]
      %v130 = vld [vmem:[%s112 + $0x50] sm:$0xff]
      %v131 = vld [vmem:[%s112 + $0x58] sm:$0xff]
      %v132 = vld [vmem:[%s112 + $0x60] sm:$0xff]
      %v133 = vld [vmem:[%s112 + $0x68] sm:$0xff]
      %v134 = vld [vmem:[%s112 + $0x70] sm:$0xff]
      %v135 = vld [vmem:[%s112 + $0x78] sm:$0xff]
      %v136 = vmul.f32 %v120, %v120
      %v137 = vmul.f32 %v121, %v121
      %v138 = vmul.f32 %v122, %v122
      %v139 = vmul.f32 %v123, %v123
      %v140 = vmul.f32 %v124, %v124
      %v141 = vmul.f32 %v125, %v125
      %v142 = vmul.f32 %v126, %v126
      %v143 = vmul.f32 %v127, %v127
      %v144 = vmul.f32 %v128, %v128
      %v145 = vmul.f32 %v129, %v129
      %v146 = vmul.f32 %v130, %v130
      %v147 = vmul.f32 %v131, %v131
      %v148 = vmul.f32 %v132, %v132
      %v149 = vmul.f32 %v133, %v133
      %v150 = vmul.f32 %v134, %v134
      %v151 = vmul.f32 %v135, %v135
      %vm152 = vcmask 523264
      %v153 = vsel %vm152, %v136, 0.0
      %154 = vadd.xlane.f32.xlu0 %v153
      %v155 = vpop.xlane.xlu0 %154
      %v156 = vsel %vm152, %v137, 0.0
      %157 = vadd.xlane.f32.xlu0 %v156
      %v158 = vpop.xlane.xlu0 %157
      %v159 = vsel %vm152, %v138, 0.0
      %160 = vadd.xlane.f32.xlu0 %v159
      %v161 = vpop.xlane.xlu0 %160
      %v162 = vsel %vm152, %v139, 0.0
      %163 = vadd.xlane.f32.xlu0 %v162
      %v164 = vpop.xlane.xlu0 %163
      %v165 = vsel %vm152, %v140, 0.0
      %166 = vadd.xlane.f32.xlu0 %v165
      %v167 = vpop.xlane.xlu0 %166
      %v168 = vsel %vm152, %v141, 0.0
      %169 = vadd.xlane.f32.xlu0 %v168
      %v170 = vpop.xlane.xlu0 %169
      %v171 = vsel %vm152, %v142, 0.0
      %172 = vadd.xlane.f32.xlu0 %v171
      %v173 = vpop.xlane.xlu0 %172
      %v174 = vsel %vm152, %v143, 0.0
      %175 = vadd.xlane.f32.xlu0 %v174
      %v176 = vpop.xlane.xlu0 %175
      %v177 = vsel %vm152, %v144, 0.0
      %178 = vadd.xlane.f32.xlu0 %v177
      %v179 = vpop.xlane.xlu0 %178
      %v180 = vsel %vm152, %v145, 0.0
      %181 = vadd.xlane.f32.xlu0 %v180
      %v182 = vpop.xlane.xlu0 %181
      %v183 = vsel %vm152, %v146, 0.0
      %184 = vadd.xlane.f32.xlu0 %v183
      %v185 = vpop.xlane.xlu0 %184
      %v186 = vsel %vm152, %v147, 0.0
      %187 = vadd.xlane.f32.xlu0 %v186
      %v188 = vpop.xlane.xlu0 %187
      %v189 = vsel %vm152, %v148, 0.0
      %190 = vadd.xlane.f32.xlu0 %v189
      %v191 = vpop.xlane.xlu0 %190
      %v192 = vsel %vm152, %v149, 0.0
      %193 = vadd.xlane.f32.xlu0 %v192
      %v194 = vpop.xlane.xlu0 %193
      %v195 = vsel %vm152, %v150, 0.0
      %196 = vadd.xlane.f32.xlu0 %v195
      %v197 = vpop.xlane.xlu0 %196
      %v198 = vsel %vm152, %v151, 0.0
      %199 = vadd.xlane.f32.xlu0 %v198
      %v200 = vpop.xlane.xlu0 %199
      %v201 = vmax.f32 %v155, 1e-24
      %v202 = vmax.f32 %v158, 1e-24
      %v203 = vmax.f32 %v161, 1e-24
      %v204 = vmax.f32 %v164, 1e-24
      %v205 = vmax.f32 %v167, 1e-24
      %v206 = vmax.f32 %v170, 1e-24
      %v207 = vmax.f32 %v173, 1e-24
      %v208 = vmax.f32 %v176, 1e-24
      %v209 = vmax.f32 %v179, 1e-24
      %v210 = vmax.f32 %v182, 1e-24
      %v211 = vmax.f32 %v185, 1e-24
      %v212 = vmax.f32 %v188, 1e-24
      %v213 = vmax.f32 %v191, 1e-24
      %v214 = vmax.f32 %v194, 1e-24
      %v215 = vmax.f32 %v197, 1e-24
      %v216 = vmax.f32 %v200, 1e-24
      %v217 = vrsqrt.pop %v201
      %v218 = vmul.f32 %v217, %v201
      %v219 = vmul.f32 %v218, %v217
      %v220 = vmul.f32 0.5, %v219
      %v221 = vsub.f32 1.5, %v220
      %v222 = vmul.f32 %v217, %v221
      %vm223 = vweird.f32 %v201
      %vm224 = vweird.f32 %v217
      %vm225 = vmor %vm223, %vm224
      %v226 = vsel %vm225, %v217, %v222
      %v227 = vrsqrt.pop %v202
      %v228 = vmul.f32 %v227, %v202
      %v229 = vmul.f32 %v228, %v227
      %v230 = vmul.f32 0.5, %v229
      %v231 = vsub.f32 1.5, %v230
      %v232 = vmul.f32 %v227, %v231
      %vm233 = vweird.f32 %v202
      %vm234 = vweird.f32 %v227
      %vm235 = vmor %vm233, %vm234
      %v236 = vsel %vm235, %v227, %v232
      %v237 = vrsqrt.pop %v203
      %v238 = vmul.f32 %v237, %v203
      %v239 = vmul.f32 %v238, %v237
      %v240 = vmul.f32 0.5, %v239
      %v241 = vsub.f32 1.5, %v240
      %v242 = vmul.f32 %v237, %v241
      %vm243 = vweird.f32 %v203
      %vm244 = vweird.f32 %v237
      %vm245 = vmor %vm243, %vm244
      %v246 = vsel %vm245, %v237, %v242
      %v247 = vrsqrt.pop %v204
      %v248 = vmul.f32 %v247, %v204
      %v249 = vmul.f32 %v248, %v247
      %v250 = vmul.f32 0.5, %v249
      %v251 = vsub.f32 1.5, %v250
      %v252 = vmul.f32 %v247, %v251
      %vm253 = vweird.f32 %v204
      %vm254 = vweird.f32 %v247
      %vm255 = vmor %vm253, %vm254
      %v256 = vsel %vm255, %v247, %v252
      %v257 = vrsqrt.pop %v205
      %v258 = vmul.f32 %v257, %v205
      %v259 = vmul.f32 %v258, %v257
      %v260 = vmul.f32 0.5, %v259
      %v261 = vsub.f32 1.5, %v260
      %v262 = vmul.f32 %v257, %v261
      %vm263 = vweird.f32 %v205
      %vm264 = vweird.f32 %v257
      %vm265 = vmor %vm263, %vm264
      %v266 = vsel %vm265, %v257, %v262
      %v267 = vrsqrt.pop %v206
      %v268 = vmul.f32 %v267, %v206
      %v269 = vmul.f32 %v268, %v267
      %v270 = vmul.f32 0.5, %v269
      %v271 = vsub.f32 1.5, %v270
      %v272 = vmul.f32 %v267, %v271
      %vm273 = vweird.f32 %v206
      %vm274 = vweird.f32 %v267
      %vm275 = vmor %vm273, %vm274
      %v276 = vsel %vm275, %v267, %v272
      %v277 = vrsqrt.pop %v207
      %v278 = vmul.f32 %v277, %v207
      %v279 = vmul.f32 %v278, %v277
      %v280 = vmul.f32 0.5, %v279
      %v281 = vsub.f32 1.5, %v280
      %v282 = vmul.f32 %v277, %v281
      %vm283 = vweird.f32 %v207
      %vm284 = vweird.f32 %v277
      %vm285 = vmor %vm283, %vm284
      %v286 = vsel %vm285, %v277, %v282
      %v287 = vrsqrt.pop %v208
      %v288 = vmul.f32 %v287, %v208
      %v289 = vmul.f32 %v288, %v287
      %v290 = vmul.f32 0.5, %v289
      %v291 = vsub.f32 1.5, %v290
      %v292 = vmul.f32 %v287, %v291
      %vm293 = vweird.f32 %v208
      %vm294 = vweird.f32 %v287
      %vm295 = vmor %vm293, %vm294
      %v296 = vsel %vm295, %v287, %v292
      %v297 = vrsqrt.pop %v209
      %v298 = vmul.f32 %v297, %v209
      %v299 = vmul.f32 %v298, %v297
      %v300 = vmul.f32 0.5, %v299
      %v301 = vsub.f32 1.5, %v300
      %v302 = vmul.f32 %v297, %v301
      %vm303 = vweird.f32 %v209
      %vm304 = vweird.f32 %v297
      %vm305 = vmor %vm303, %vm304
      %v306 = vsel %vm305, %v297, %v302
      %v307 = vrsqrt.pop %v210
      %v308 = vmul.f32 %v307, %v210
      %v309 = vmul.f32 %v308, %v307
      %v310 = vmul.f32 0.5, %v309
      %v311 = vsub.f32 1.5, %v310
      %v312 = vmul.f32 %v307, %v311
      %vm313 = vweird.f32 %v210
      %vm314 = vweird.f32 %v307
      %vm315 = vmor %vm313, %vm314
      %v316 = vsel %vm315, %v307, %v312
      %v317 = vrsqrt.pop %v211
      %v318 = vmul.f32 %v317, %v211
      %v319 = vmul.f32 %v318, %v317
      %v320 = vmul.f32 0.5, %v319
      %v321 = vsub.f32 1.5, %v320
      %v322 = vmul.f32 %v317, %v321
      %vm323 = vweird.f32 %v211
      %vm324 = vweird.f32 %v317
      %vm325 = vmor %vm323, %vm324
      %v326 = vsel %vm325, %v317, %v322
      %v327 = vrsqrt.pop %v212
      %v328 = vmul.f32 %v327, %v212
      %v329 = vmul.f32 %v328, %v327
      %v330 = vmul.f32 0.5, %v329
      %v331 = vsub.f32 1.5, %v330
      %v332 = vmul.f32 %v327, %v331
      %vm333 = vweird.f32 %v212
      %vm334 = vweird.f32 %v327
      %vm335 = vmor %vm333, %vm334
      %v336 = vsel %vm335, %v327, %v332
      %v337 = vrsqrt.pop %v213
      %v338 = vmul.f32 %v337, %v213
      %v339 = vmul.f32 %v338, %v337
      %v340 = vmul.f32 0.5, %v339
      %v341 = vsub.f32 1.5, %v340
      %v342 = vmul.f32 %v337, %v341
      %vm343 = vweird.f32 %v213
      %vm344 = vweird.f32 %v337
      %vm345 = vmor %vm343, %vm344
      %v346 = vsel %vm345, %v337, %v342
      %v347 = vrsqrt.pop %v214
      %v348 = vmul.f32 %v347, %v214
      %v349 = vmul.f32 %v348, %v347
      %v350 = vmul.f32 0.5, %v349
      %v351 = vsub.f32 1.5, %v350
      %v352 = vmul.f32 %v347, %v351
      %vm353 = vweird.f32 %v214
      %vm354 = vweird.f32 %v347
      %vm355 = vmor %vm353, %vm354
      %v356 = vsel %vm355, %v347, %v352
      %v357 = vrsqrt.pop %v215
      %v358 = vmul.f32 %v357, %v215
      %v359 = vmul.f32 %v358, %v357
      %v360 = vmul.f32 0.5, %v359
      %v361 = vsub.f32 1.5, %v360
      %v362 = vmul.f32 %v357, %v361
      %vm363 = vweird.f32 %v215
      %vm364 = vweird.f32 %v357
      %vm365 = vmor %vm363, %vm364
      %v366 = vsel %vm365, %v357, %v362
      %v367 = vrsqrt.pop %v216
      %v368 = vmul.f32 %v367, %v216
      %v369 = vmul.f32 %v368, %v367
      %v370 = vmul.f32 0.5, %v369
      %v371 = vsub.f32 1.5, %v370
      %v372 = vmul.f32 %v367, %v371
      %vm373 = vweird.f32 %v216
      %vm374 = vweird.f32 %v367
      %vm375 = vmor %vm373, %vm374
      %v376 = vsel %vm375, %v367, %v372
      %v377 = vmul.f32 %v120, %v226
      %v378 = vmul.f32 %v121, %v236
      %v379 = vmul.f32 %v122, %v246
      %v380 = vmul.f32 %v123, %v256
      %v381 = vmul.f32 %v124, %v266
      %v382 = vmul.f32 %v125, %v276
      %v383 = vmul.f32 %v126, %v286
      %v384 = vmul.f32 %v127, %v296
      %v385 = vmul.f32 %v128, %v306
      %v386 = vmul.f32 %v129, %v316
      %v387 = vmul.f32 %v130, %v326
      %v388 = vmul.f32 %v131, %v336
      %v389 = vmul.f32 %v132, %v346
      %v390 = vmul.f32 %v133, %v356
      %v391 = vmul.f32 %v134, %v366
      %v392 = vmul.f32 %v135, %v376
      %393 = vst.msk [vmem:[%s118] sm:$0xff] %vm152, %v377
      %394 = vst.msk [vmem:[%s118 + $0x8] sm:$0xff] %vm152, %v378
      %395 = vst.msk [vmem:[%s118 + $0x10] sm:$0xff] %vm152, %v379
      %396 = vst.msk [vmem:[%s118 + $0x18] sm:$0xff] %vm152, %v380
      %397 = vst.msk [vmem:[%s118 + $0x20] sm:$0xff] %vm152, %v381
      %398 = vst.msk [vmem:[%s118 + $0x28] sm:$0xff] %vm152, %v382
      %399 = vst.msk [vmem:[%s118 + $0x30] sm:$0xff] %vm152, %v383
      %400 = vst.msk [vmem:[%s118 + $0x38] sm:$0xff] %vm152, %v384
      %401 = vst.msk [vmem:[%s118 + $0x40] sm:$0xff] %vm152, %v385
      %402 = vst.msk [vmem:[%s118 + $0x48] sm:$0xff] %vm152, %v386
      %403 = vst.msk [vmem:[%s118 + $0x50] sm:$0xff] %vm152, %v387
      %404 = vst.msk [vmem:[%s118 + $0x58] sm:$0xff] %vm152, %v388
      %405 = vst.msk [vmem:[%s118 + $0x60] sm:$0xff] %vm152, %v389
      %406 = vst.msk [vmem:[%s118 + $0x68] sm:$0xff] %vm152, %v390
      %407 = vst.msk [vmem:[%s118 + $0x70] sm:$0xff] %vm152, %v391
      %408 = vst.msk [vmem:[%s118 + $0x78] sm:$0xff] %vm152, %v392
      %s409 = smul.u32 16, %s12
      %p410 = scmp.lt.s32.totalorder %s409, 47
      %s411 = scalar_select %p410, %s409, 47
      %s412 = smul.addr %s411, 8
      %s413 = scalar_lea.vmem %s1, %s412
      // Predicated region
      $region25: #{tpu_custom_call.1} parent=23 // pred_check
        %p414 = pneg %p56
      $region26: #{tpu_custom_call.1} parent=23 // pred_check_branch
        %416 = sbr.rel (%p414) target = $region28
      $region27: #{tpu_custom_call.1} parent=23 // pred_region
        %s417 = smul.u32 16, %s12
      $region28: #{tpu_custom_call.1} parent=23 // pred_fallthru
        _
    $region24: #{tpu_custom_call.1} parent=5 // pred_fallthru
      _
    %p418 = scmp.le.s32.totalorder 2, %s7
    // Predicated region
    $region29: #{tpu_custom_call.1} parent=5 // pred_check
      %p419 = pneg %p418
    $region30: #{tpu_custom_call.1} parent=5 // pred_check_branch
      %421 = sbr.rel (%p419) target = $region32
    $region31: #{tpu_custom_call.1} parent=5 // pred_region
      %s422 = ssub.s32 %s7, 2
      // Predicated region
      $region33: #{tpu_custom_call.1} parent=31 // pred_check
        %p423 = pneg %p62
      $region34: #{tpu_custom_call.1} parent=31 // pred_check_branch
        %425 = sbr.rel (%p423) target = $region36
      $region35: #{tpu_custom_call.1} parent=31 // pred_region
        %s426 = smul.u32 16, %s13
        %p427 = scmp.lt.s32.totalorder %s426, 47
        %s428 = scalar_select %p427, %s426, 47
        %s429 = smul.addr %s428, 8
        %s430 = scalar_lea.vmem %s1, %s429
      $region36: #{tpu_custom_call.1} parent=31 // pred_fallthru
        _
    $region32: #{tpu_custom_call.1} parent=5 // pred_fallthru
      _
  $region6: #{tpu_custom_call.1} parent=0 // loop_footer
    %s11 = sadd.s32 1, %s7
  $region7: #{tpu_custom_call.1} parent=0 // loop_footer_branch
    %6 = sbr.rel target = $region3
  $region8: #{tpu_custom_call.1} parent=0 // loop_exit
    _

</llo_original>
